<compile_context>
chip_gen: v6e
topology: v6e:2x2x1
jax: 0.10.0
libtpu: 0.0.40
codegen_flags: <defaults>
</compile_context>

<pallas_src>
import functools

import jax
import jax.numpy as jnp
from jax import lax
from jax.experimental import pallas as pl
from jax.experimental.pallas import tpu as pltpu


def _tv_loss_ref(x):
    """Pure-JAX reference, identical to the PyTorch TVLoss.forward."""
    x = x.astype(jnp.float32)
    b, c, h, w = x.shape
    count_h = c * (h - 1) * w
    count_w = c * h * (w - 1)
    h_tv = jnp.sum((x[:, :, 1:, :] - x[:, :, : h - 1, :]) ** 2)
    w_tv = jnp.sum((x[:, :, :, 1:] - x[:, :, :, : w - 1]) ** 2)
    return 2.0 * (h_tv / count_h + w_tv / count_w) / b


def _vmem_capacity_bytes():
    try:
        return int(pltpu.get_tpu_info().vmem_capacity_bytes)
    except Exception:
        return 64 * 1024 * 1024          # conservative: v7x per-TensorCore VMEM


def _num_tensorcores():
    """Best-effort TensorCore count (1 on v5e/v6e, 2 on v7x)."""
    try:
        info = pltpu.get_tpu_info()
        for name in ("num_cores", "num_tensorcores", "tensorcore_count"):
            v = getattr(info, name, None)
            if isinstance(v, int) and 1 <= v <= 8:
                return min(v, 2)
    except Exception:
        pass
    # Unknown: assume 2.  On single-TC chips the only cost is at most one
    # duplicated (fully masked) block of extra HBM reads.
    return 2


def _tv_kernel(x_ref, out_h_ref, out_w_ref, *, w, hw, p_planes, steps,
               n_valid, needs_mask):
    i = pl.program_id(1)

    @pl.when(i == 0)
    def _():
        out_h_ref[...] = jnp.zeros_like(out_h_ref)
        out_w_ref[...] = jnp.zeros_like(out_w_ref)

    x = x_ref[...].astype(jnp.float32)                      # (P, H*W)

    if needs_mask:
        # Zero planes past the valid plane count (partial last block and/or a
        # clamped duplicate block from the TC split).  Diffs never cross
        # planes, so zeroed planes contribute exactly 0 to both sums.
        p = pl.program_id(0)
        first = (p * steps + i) * p_planes
        plane = first + lax.broadcasted_iota(jnp.int32, (p_planes, 1), 0)
        x = jnp.where(plane < n_valid, x, 0.0)

    # Flattened index j = r*W + c of each plane element (cheap (1, H*W) iota).
    lane = lax.broadcasted_iota(jnp.int32, (1, hw), 1)

    # Horizontal (W-direction) diffs: neighbour at j-1, valid when c = j%W != 0.
    dw = jnp.where(lane % w != 0, x - pltpu.roll(x, 1, 1), 0.0)
    # Vertical (H-direction) diffs: neighbour at j-W, valid when r = j//W != 0.
    dh = jnp.where(lane >= w, x - pltpu.roll(x, w, 1), 0.0)

    # Scalar accumulation into the chunk's resident output blocks; the
    # cross-lane reduce uses the XLU slot, idle in this HBM-bound body.
    out_h_ref[...] += jnp.sum(dh * dh)
    out_w_ref[...] += jnp.sum(dw * dw)


def tv_loss(x, *, target_vmem_fraction=0.55, num_tensorcores=None):
    """Total variation loss, semantics identical to the PyTorch TVLoss.forward."""
    b, c, h, w = x.shape

    if h < 2 or w < 2:
        # Degenerate spatial dims: counts are 0 -> inf/nan, same as torch.
        return _tv_loss_ref(x)

    n = b * c
    hw = h * w
    planes = x.reshape(n, hw)            # free row-major collapse, lane-dense rows

    # ---------------- block sizing (derived from the chip's VMEM) ------------
    vmem_cap = _vmem_capacity_bytes()
    vmem_limit = min(int(vmem_cap * 0.85), 110 * 1024 * 1024)
    hw_pad = ((hw + 127) // 128) * 128   # lane padding inside (8,128) VMEM tiles
    # Crude per-plane-row VMEM model: double-buffered native input block plus
    # ~5 live f32-sized temporaries (upcast, rolls, masked diffs, squares).
    per_row = 2 * hw_pad * x.dtype.itemsize + 5 * hw_pad * 4
    fit = int(target_vmem_fraction * vmem_limit) // per_row

    if fit >= n:
        p_planes = n                     # one block covering every plane
    elif fit >= 8:
        p_planes = (fit // 8) * 8        # sublane-aligned block height
    else:
        # A single plane (plus temporaries) does not fit comfortably in VMEM.
        # TODO(synk): H-tile huge planes with a 1-row halo instead of falling
        # back to the pure-JAX reference.
        return _tv_loss_ref(x)

    num_blocks = pl.cdiv(n, p_planes)
    n_cores = num_tensorcores if num_tensorcores is not None else _num_tensorcores()
    n_chunks = max(1, min(n_cores, num_blocks))
    steps = pl.cdiv(num_blocks, n_chunks)
    # Only emit the in-kernel plane mask when the grid does not exactly tile n.
    needs_mask = (n_chunks * steps * p_planes) != n

    kernel = functools.partial(
        _tv_kernel, w=w, hw=hw, p_planes=p_planes, steps=steps, n_valid=n,
        needs_mask=needs_mask)

    def x_map(pi, ii):
        # Clamp so trailing duplicate grid steps re-read the last real block
        # (their contribution is masked to zero in the kernel) instead of
        # DMA-ing out of bounds.
        return (jnp.minimum(pi * steps + ii, num_blocks - 1), 0)

    out_h, out_w = pl.pallas_call(
        kernel,
        out_shape=(jax.ShapeDtypeStruct((n_chunks, 1, 1), jnp.float32),
                   jax.ShapeDtypeStruct((n_chunks, 1, 1), jnp.float32)),
        grid_spec=pltpu.PrefetchScalarGridSpec(
            num_scalar_prefetch=0,
            grid=(n_chunks, steps),
            in_specs=[pl.BlockSpec((p_planes, hw), x_map)],
            out_specs=[pl.BlockSpec((1, 1, 1), lambda pi, ii: (pi, 0, 0)),
                       pl.BlockSpec((1, 1, 1), lambda pi, ii: (pi, 0, 0))],
        ),
        compiler_params=pltpu.CompilerParams(
            dimension_semantics=("parallel", "arbitrary"),
            vmem_limit_bytes=vmem_limit,
        ),
    )(planes)

    h_tv = jnp.sum(out_h)
    w_tv = jnp.sum(out_w)
    count_h = c * (h - 1) * w
    count_w = c * h * (w - 1)
    return 2.0 * (h_tv / count_h + w_tv / count_w) / b


if __name__ == "__main__":
    key = jax.random.PRNGKey(0)
    x = jax.random.normal(key, (2, 4, 16, 16), dtype=jnp.float32)

    out = tv_loss(x)
    jax.block_until_ready(out)

    ref = _tv_loss_ref(x)
    assert jnp.allclose(out, ref, rtol=1e-5, atol=1e-5), (out, ref)
    print("KERNEL_OK")
</pallas_src>

<mosaic_0001>
module attributes {stable_mosaic.version = 11 : i64} {
  func.func @_tv_kernel(%arg0: i32, %arg1: i32, %arg2: memref<8x256xf32, #tpu.memory_space<vmem>>, %arg3: memref<1x1x1xf32, #tpu.memory_space<vmem>>, %arg4: memref<1x1x1xf32, #tpu.memory_space<vmem>>) attributes {dimension_semantics = [#tpu.dimension_semantics<parallel>, #tpu.dimension_semantics<arbitrary>], iteration_bounds = array<i64: 1, 1>, scalar_prefetch = 0 : i64, scratch_operands = 0 : i64, tpu.core_type = #tpu.core_type<tc>, window_params = [{transform_indices = @transform_0, window_bounds = array<i64: 8, 256>}, {transform_indices = @transform_1, window_bounds = array<i64: 1, 1, 1>}, {transform_indices = @transform_2, window_bounds = array<i64: 1, 1, 1>}]} {
    %c0_i32 = arith.constant 0 : i32
    %0 = arith.cmpi eq, %arg1, %c0_i32 : i32
    %1 = arith.extui %0 : i1 to i32
    %c0_i32_0 = arith.constant 0 : i32
    %2 = arith.cmpi ne, %1, %c0_i32_0 : i32
    scf.if %2 {
      %cst_25 = arith.constant 0.000000e+00 : f32
      %55 = vector.broadcast %cst_25 : f32 to vector<1x1x1xf32>
      %c0_26 = arith.constant 0 : index
      %c0_27 = arith.constant 0 : index
      %c0_28 = arith.constant 0 : index
      %56 = vector.load %arg3[%c0_26, %c0_27, %c0_28] : memref<1x1x1xf32, #tpu.memory_space<vmem>>, vector<1x1x1xf32>
      tpu.vector_store %arg3[%c0_26, %c0_27, %c0_28], %55 {strides = array<i32>} : memref<1x1x1xf32, #tpu.memory_space<vmem>>, vector<1x1x1xf32>,
      %cst_29 = arith.constant 0.000000e+00 : f32
      %57 = vector.broadcast %cst_29 : f32 to vector<1x1x1xf32>
      %c0_30 = arith.constant 0 : index
      %c0_31 = arith.constant 0 : index
      %c0_32 = arith.constant 0 : index
      %58 = vector.load %arg4[%c0_30, %c0_31, %c0_32] : memref<1x1x1xf32, #tpu.memory_space<vmem>>, vector<1x1x1xf32>
      tpu.vector_store %arg4[%c0_30, %c0_31, %c0_32], %57 {strides = array<i32>} : memref<1x1x1xf32, #tpu.memory_space<vmem>>, vector<1x1x1xf32>,
    } else {
    }
    %c0 = arith.constant 0 : index
    %c0_1 = arith.constant 0 : index
    %3 = vector.load %arg2[%c0, %c0_1] : memref<8x256xf32, #tpu.memory_space<vmem>>, vector<8x256xf32>
    %4 = tpu.iota {dimensions = array<i32: 1>} : vector<1x256xi32>
    %c16_i32 = arith.constant 16 : i32
    %c0_i32_2 = arith.constant 0 : i32
    %5 = arith.cmpi eq, %c16_i32, %c0_i32_2 : i32
    %c1_i32 = arith.constant 1 : i32
    %6 = arith.select %5, %c1_i32, %c16_i32 : i32
    %7 = vector.broadcast %6 : i32 to vector<1x256xi32>
    %8 = arith.remsi %4, %7 : vector<1x256xi32>
    %c0_i32_3 = arith.constant 0 : i32
    %9 = vector.broadcast %c0_i32_3 : i32 to vector<1x256xi32>
    %10 = arith.cmpi ne, %8, %9 : vector<1x256xi32>
    %c0_i32_4 = arith.constant 0 : i32
    %11 = vector.broadcast %c0_i32_4 : i32 to vector<1x256xi32>
    %12 = arith.cmpi slt, %8, %11 : vector<1x256xi32>
    %c0_i32_5 = arith.constant 0 : i32
    %13 = arith.cmpi slt, %6, %c0_i32_5 : i32
    %14 = vector.broadcast %13 : i1 to vector<1x256xi1>
    %15 = vector.broadcast %14 : vector<1x256xi1> to vector<1x256xi1>
    %16 = arith.xori %12, %15 : vector<1x256xi1>
    %17 = arith.andi %16, %10 : vector<1x256xi1>
    %18 = vector.broadcast %6 : i32 to vector<1x256xi32>
    %19 = arith.addi %8, %18 : vector<1x256xi32>
    %20 = arith.select %17, %19, %8 : vector<1x256xi1>, vector<1x256xi32>
    %c0_i32_6 = arith.constant 0 : i32
    %21 = vector.broadcast %c0_i32_6 : i32 to vector<1x256xi32>
    %22 = arith.cmpi ne, %20, %21 : vector<1x256xi32>
    %c1_i32_7 = arith.constant 1 : i32
    %23 = tpu.dynamic_rotate %3 by %c1_i32_7 dim 1 : vector<8x256xf32>, i32 -> vector<8x256xf32>
    %24 = arith.subf %3, %23 : vector<8x256xf32>
    %cst = arith.constant 0.000000e+00 : f32
    %25 = vector.shape_cast %22 : vector<1x256xi1> to vector<1x256xi1>
    %26 = vector.broadcast %25 : vector<1x256xi1> to vector<8x256xi1>
    %27 = vector.broadcast %cst : f32 to vector<8x256xf32>
    %28 = arith.select %26, %24, %27 : vector<8x256xi1>, vector<8x256xf32>
    %c16_i32_8 = arith.constant 16 : i32
    %29 = vector.broadcast %c16_i32_8 : i32 to vector<1x256xi32>
    %30 = arith.cmpi sge, %4, %29 : vector<1x256xi32>
    %c16_i32_9 = arith.constant 16 : i32
    %31 = tpu.dynamic_rotate %3 by %c16_i32_9 dim 1 : vector<8x256xf32>, i32 -> vector<8x256xf32>
    %32 = arith.subf %3, %31 : vector<8x256xf32>
    %cst_10 = arith.constant 0.000000e+00 : f32
    %33 = vector.shape_cast %30 : vector<1x256xi1> to vector<1x256xi1>
    %34 = vector.broadcast %33 : vector<1x256xi1> to vector<8x256xi1>
    %35 = vector.broadcast %cst_10 : f32 to vector<8x256xf32>
    %36 = arith.select %34, %32, %35 : vector<8x256xi1>, vector<8x256xf32>
    %c0_11 = arith.constant 0 : index
    %c0_12 = arith.constant 0 : index
    %c0_13 = arith.constant 0 : index
    %37 = vector.load %arg3[%c0_11, %c0_12, %c0_13] : memref<1x1x1xf32, #tpu.memory_space<vmem>>, vector<1x1x1xf32>
    %38 = arith.mulf %36, %36 : vector<8x256xf32>
    %39 = vector.shape_cast %38 : vector<8x256xf32> to vector<1x8x256xf32>
    %cst_14 = arith.constant dense<0.000000e+00> : vector<1xf32>
    %40 = vector.multi_reduction <add>, %39, %cst_14 [1, 2] : vector<1x8x256xf32> to vector<1xf32>
    %41 = vector.shape_cast %40 : vector<1xf32> to vector<1x1x1xf32>
    %42 = vector.extract %41[0, 0, 0] : f32 from vector<1x1x1xf32>
    %43 = vector.broadcast %42 : f32 to vector<1x1x1xf32>
    %44 = arith.addf %37, %43 : vector<1x1x1xf32>
    %c0_15 = arith.constant 0 : index
    %c0_16 = arith.constant 0 : index
    %c0_17 = arith.constant 0 : index
    %45 = vector.load %arg3[%c0_15, %c0_16, %c0_17] : memref<1x1x1xf32, #tpu.memory_space<vmem>>, vector<1x1x1xf32>
    tpu.vector_store %arg3[%c0_15, %c0_16, %c0_17], %44 {strides = array<i32>} : memref<1x1x1xf32, #tpu.memory_space<vmem>>, vector<1x1x1xf32>,
    %c0_18 = arith.constant 0 : index
    %c0_19 = arith.constant 0 : index
    %c0_20 = arith.constant 0 : index
    %46 = vector.load %arg4[%c0_18, %c0_19, %c0_20] : memref<1x1x1xf32, #tpu.memory_space<vmem>>, vector<1x1x1xf32>
    %47 = arith.mulf %28, %28 : vector<8x256xf32>
    %48 = vector.shape_cast %47 : vector<8x256xf32> to vector<1x8x256xf32>
    %cst_21 = arith.constant dense<0.000000e+00> : vector<1xf32>
    %49 = vector.multi_reduction <add>, %48, %cst_21 [1, 2] : vector<1x8x256xf32> to vector<1xf32>
    %50 = vector.shape_cast %49 : vector<1xf32> to vector<1x1x1xf32>
    %51 = vector.extract %50[0, 0, 0] : f32 from vector<1x1x1xf32>
    %52 = vector.broadcast %51 : f32 to vector<1x1x1xf32>
    %53 = arith.addf %46, %52 : vector<1x1x1xf32>
    %c0_22 = arith.constant 0 : index
    %c0_23 = arith.constant 0 : index
    %c0_24 = arith.constant 0 : index
    %54 = vector.load %arg4[%c0_22, %c0_23, %c0_24] : memref<1x1x1xf32, #tpu.memory_space<vmem>>, vector<1x1x1xf32>
    tpu.vector_store %arg4[%c0_22, %c0_23, %c0_24], %53 {strides = array<i32>} : memref<1x1x1xf32, #tpu.memory_space<vmem>>, vector<1x1x1xf32>,
    return
  }
  func.func @transform_0(%arg0: i32, %arg1: i32) -> (i32, i32) {
    %c1_i32 = arith.constant 1 : i32
    %0 = arith.muli %arg0, %c1_i32 : i32
    %1 = arith.addi %0, %arg1 : i32
    %c0_i32 = arith.constant 0 : i32
    %2 = arith.minsi %1, %c0_i32 : i32
    %c0_i32_0 = arith.constant 0 : i32
    %c0_i32_1 = arith.constant 0 : i32
    return %2, %c0_i32_0 : i32, i32
  }
  func.func @transform_1(%arg0: i32, %arg1: i32) -> (i32, i32, i32) {
    %c0_i32 = arith.constant 0 : i32
    %c0_i32_0 = arith.constant 0 : i32
    %c0_i32_1 = arith.constant 0 : i32
    return %arg0, %c0_i32, %c0_i32_0 : i32, i32, i32
  }
  func.func @transform_2(%arg0: i32, %arg1: i32) -> (i32, i32, i32) {
    %c0_i32 = arith.constant 0 : i32
    %c0_i32_0 = arith.constant 0 : i32
    %c0_i32_1 = arith.constant 0 : i32
    return %arg0, %c0_i32, %c0_i32_0 : i32, i32, i32
  }
}

</mosaic_0001>

<llo_original>
// kernel: tpu_custom_call.1
$region0: #{tpu_custom_call.1}
  #allocation0 [shape = 'u32[]', space=smem, size = 0x4, offset = 0x4, fixed_abs, tag = 'smem constant byte address 0x4 - core index']
  #allocation1 [shape = 'u32[144,128]{1,0:T(1,128)}', space=vmem, size = 0x12000, scoped, tag = 'internal scratch']
  %s0 = inlined_call_operand.hbm [shape: f32[8,256], index: 0, kind: input, shape index: {}]
  %s1 = inlined_call_operand.hbm [shape: f32[1,1,1], index: 1, kind: output, shape index: {0}]
  %s2 = inlined_call_operand.hbm [shape: f32[1,1,1], index: 2, kind: output, shape index: {1}]
  %3 = xla_tuple %s1, %s2
  %s4 = sld [smem:[#allocation0]]
  $region30: #{tpu_custom_call.1} parent=0
    _
  %s6 = ssub.s32 1, %s4
  %s7 = scalar_select 0, %s6, %s4
  $region1: #{tpu_custom_call.1} parent=0
    #allocation2 [shape = 'u8[8192]{0}', space=vmem, size = 0x2000, scoped, tag = 'input window, operand 0, single buffered']
    #allocation3 [shape = 's32[1]{0}', space=sflag, size = 0x4, scoped, tag = 'scoped memory for tpu_custom_call.1']
    #allocation4 [shape = 's32[1]{0}', space=sflag, size = 0x4, scoped, tag = 'scoped memory for tpu_custom_call.1']
    #allocation5 [shape = 'u8[512]{0}', space=vmem, size = 0x400, scoped, tag = 'output window, operand 0, single buffered']
    #allocation6 [shape = 'u8[512]{0}', space=vmem, size = 0x400, scoped, tag = 'output window, operand 1, single buffered']
    #allocation7 [shape = 's32[1]{0}', space=sflag, size = 0x4, scoped, tag = 'scoped memory for tpu_custom_call.1']
    %8 = vsyncpa [#allocation3], 0
    %9 = vsyncpa [#allocation4], 0
    %10 = vsyncpa [#allocation7], 0
    // Predicated region
    $region2: #{tpu_custom_call.1} parent=1 // pred_check
      _
    $region3: #{tpu_custom_call.1} parent=1 // pred_check_branch
      %12 = sbr.rel (0) target = $region5
    $region4: #{tpu_custom_call.1} parent=1 // pred_region
      %s13 = sadd.s32 0, 0
      %p14 = scmp.lt.s32.totalorder %s13, 0
      %s15 = scalar_select %p14, %s13, 0
      %s17 = ssub.s32 256, 256
      %18 = vsyncadd [#allocation3], %s17
      %s19 = smul.addr %s15, 2
      %s20 = smul.addr %s19, 128
      %s21 = scalar_lea.hbm %s0, %s20
      %s23 = sshll.u32 [#allocation2], 4
      %s24 = int_to_ptr.vmem [resolvable:$true] %s23
      %26 = dma.hbm_to_vmem [thread:$0]  %s21, 256, %s24, [#allocation3]
    $region5: #{tpu_custom_call.1} parent=1 // pred_fallthru
      _
    // Predicated region
    $region6: #{tpu_custom_call.1} parent=1 // pred_check
      _
    $region7: #{tpu_custom_call.1} parent=1 // pred_check_branch
      %28 = sbr.rel (0) target = $region9
    $region8: #{tpu_custom_call.1} parent=1 // pred_region
      %29 = dma.done [#allocation3], 256
    $region9: #{tpu_custom_call.1} parent=1 // pred_fallthru
      _
    %s30 = sadd.s32 0, 0
    %p31 = scmp.lt.s32.totalorder %s30, 0
    %s32 = scalar_select %p31, %s30, 0
    %p33 = scmp.eq.s32.totalorder 0, 0
    // Predicated region
    $region10: #{tpu_custom_call.1} parent=1 // pred_check
      %p34 = pneg %p33
    $region11: #{tpu_custom_call.1} parent=1 // pred_check_branch
      %36 = sbr.rel (%p34) target = $region13
    $region12: #{tpu_custom_call.1} parent=1 // pred_region
      %vm37 = vcmask 0
      %38 = vst.msk [vmem:[#allocation5] sm:$0x1] %vm37, 0.0
      %39 = vst.msk [vmem:[#allocation6] sm:$0x1] %vm37, 0.0
    $region13: #{tpu_custom_call.1} parent=1 // pred_fallthru
      _
    %v40 = vld [vmem:[#allocation2] sm:$0xff]
    %v41 = vld [vmem:[#allocation2 + $0x8] sm:$0xff]
    %v42 = vlaneseq
    %v43 = vand.u32 %v42, 127
    %v44 = vadd.s32 %v43, 128
    %vm45 = vcmp.lt.s32.totalorder %v43, 0
    %v46 = vsub.s32 0, %v43
    %v47 = vsel %vm45, %v46, %v43
    %v48 = vshrl.u32 %v47, 4
    %v49 = vand.u32 %v47, 15
    %v50 = vsub.s32 0, %v49
    %v51 = vsel %vm45, %v50, %v49
    %vm52 = vcmp.lt.s32.totalorder %v44, 0
    %v53 = vsub.s32 0, %v44
    %v54 = vsel %vm52, %v53, %v44
    %v55 = vshrl.u32 %v54, 4
    %v56 = vand.u32 %v54, 15
    %v57 = vsub.s32 0, %v56
    %v58 = vsel %vm52, %v57, %v56
    %vm59 = vcmp.ne.s32.totalorder %v51, 0
    %vm60 = vcmp.ne.s32.totalorder %v58, 0
    %vm61 = vcmp.lt.s32.totalorder %v51, 0
    %vm62 = vcmp.lt.s32.totalorder %v58, 0
    %vm63 = vmand %vm61, %vm59
    %vm64 = vmand %vm62, %vm60
    %v65 = vadd.s32 %v51, 16
    %v66 = vadd.s32 %v58, 16
    %v67 = vsel %vm63, %v65, %v51
    %v68 = vsel %vm64, %v66, %v58
    %vm69 = vcmp.ne.s32.totalorder %v67, 0
    %vm70 = vcmp.ne.s32.totalorder %v68, 0
    %71 = vrot.lane.b32.xlu0 %v40, 1
    %v72 = vpop.permute.xlu0 %71
    %73 = vrot.lane.b32.xlu0 %v41, 1
    %v74 = vpop.permute.xlu0 %73
    %vm75 = vcmp.lt.s32.totalorder %v43, 1
    %v76 = vsel %vm75, %v72, %v74
    %v77 = vsel %vm75, %v74, %v72
    %v78 = vsub.f32 %v40, %v77
    %v79 = vsub.f32 %v41, %v76
    %v80 = vsel %vm69, 1, 0
    %v81 = vsel %vm70, 1, 0
    %vm82 = vcmp.eq.s32.totalorder %v80, 1
    %vm83 = vcmp.eq.s32.totalorder %v81, 1
    %v84 = vsel %vm82, %v78, 0.0
    %v85 = vsel %vm83, %v79, 0.0
    %vm86 = vcmp.ge.s32.totalorder %v43, 16
    %vm87 = vcmp.ge.s32.totalorder %v44, 16
    %88 = vrot.lane.b32.xlu0 %v40, 16
    %v89 = vpop.permute.xlu0 %88
    %90 = vrot.lane.b32.xlu0 %v41, 16
    %v91 = vpop.permute.xlu0 %90
    %vm92 = vcmp.lt.s32.totalorder %v43, 16
    %v93 = vsel %vm92, %v89, %v91
    %v94 = vsel %vm92, %v91, %v89
    %v95 = vsub.f32 %v40, %v94
    %v96 = vsub.f32 %v41, %v93
    %v97 = vsel %vm86, 1, 0
    %v98 = vsel %vm87, 1, 0
    %vm99 = vcmp.eq.s32.totalorder %v97, 1
    %vm100 = vcmp.eq.s32.totalorder %v98, 1
    %v101 = vsel %vm99, %v95, 0.0
    %v102 = vsel %vm100, %v96, 0.0
    %v103 = vld [vmem:[#allocation5] sm:$0x1]
    %v104 = vmul.f32 %v101, %v101
    %v105 = vmul.f32 %v102, %v102
    %v106 = vadd.f32 %v104, %v105
    %107 = vadd.xlane.f32.xlu0 %v106
    %v108 = vpop.xlane.xlu0 %107
    %v109 = vrot.slane %v108, 4
    %v110 = vadd.f32 %v108, %v109
    %v111 = vrot.slane %v110, 2
    %v112 = vadd.f32 %v110, %v111
    %v113 = vrot.slane %v112, 1
    %v114 = vadd.f32 %v112, %v113
    %s115 = vtos %v114
    %v116 = vstv %s115
    %v117 = vadd.f32 %v103, %v116
    %vm118 = vcmask 0
    %119 = vst.msk [vmem:[#allocation5] sm:$0x1] %vm118, %v117
    %v120 = vld [vmem:[#allocation6] sm:$0x1]
    %v121 = vmul.f32 %v84, %v84
    %v122 = vmul.f32 %v85, %v85
    %v123 = vadd.f32 %v121, %v122
    %124 = vadd.xlane.f32.xlu0 %v123
    %v125 = vpop.xlane.xlu0 %124
    %v126 = vrot.slane %v125, 4
    %v127 = vadd.f32 %v125, %v126
    %v128 = vrot.slane %v127, 2
    %v129 = vadd.f32 %v127, %v128
    %v130 = vrot.slane %v129, 1
    %v131 = vadd.f32 %v129, %v130
    %s132 = vtos %v131
    %v133 = vstv %s132
    %v134 = vadd.f32 %v120, %v133
    %135 = vst.msk [vmem:[#allocation6] sm:$0x1] %vm118, %v134
    // Predicated region
    $region14: #{tpu_custom_call.1} parent=1 // pred_check
      _
    $region15: #{tpu_custom_call.1} parent=1 // pred_check_branch
      %137 = sbr.rel (0) target = $region17
    $region16: #{tpu_custom_call.1} parent=1 // pred_region
      %s139 = ssub.s32 16, 16
      %140 = vsyncadd [#allocation4], %s139
      %s142 = sshll.u32 [#allocation5], 4
      %s143 = int_to_ptr.vmem [resolvable:$true] %s142
      %145 = dma.vmem_to_hbm [thread:$0]  %s143, 16, %s1, [#allocation4]
    $region17: #{tpu_custom_call.1} parent=1 // pred_fallthru
      _
    // Predicated region
    $region18: #{tpu_custom_call.1} parent=1 // pred_check
      _
    $region19: #{tpu_custom_call.1} parent=1 // pred_check_branch
      %147 = sbr.rel (0) target = $region21
    $region20: #{tpu_custom_call.1} parent=1 // pred_region
      %s149 = ssub.s32 16, 16
      %150 = vsyncadd [#allocation7], %s149
      %s152 = sshll.u32 [#allocation6], 4
      %s153 = int_to_ptr.vmem [resolvable:$true] %s152
      %155 = dma.vmem_to_hbm [thread:$0]  %s153, 16, %s2, [#allocation7]
    $region21: #{tpu_custom_call.1} parent=1 // pred_fallthru
      _
    // Predicated region
    $region22: #{tpu_custom_call.1} parent=1 // pred_check
      _
    $region23: #{tpu_custom_call.1} parent=1 // pred_check_branch
      %157 = sbr.rel (0) target = $region25
    $region24: #{tpu_custom_call.1} parent=1 // pred_region
      %158 = dma.done [#allocation4], 16
    $region25: #{tpu_custom_call.1} parent=1 // pred_fallthru
      _
    // Predicated region
    $region26: #{tpu_custom_call.1} parent=1 // pred_check
      _
    $region27: #{tpu_custom_call.1} parent=1 // pred_check_branch
      %160 = sbr.rel (0) target = $region29
    $region28: #{tpu_custom_call.1} parent=1 // pred_region
      %161 = dma.done [#allocation7], 16
    $region29: #{tpu_custom_call.1} parent=1 // pred_fallthru
      _
    %162 = vsyncpa [#allocation3], 1
    %163 = vsyncpa [#allocation4], 1
    %164 = vsyncpa [#allocation7], 1

</llo_original>
